<compile_context>
chip_gen: v5e
topology: v5e:2x2
jax: 0.10.0
libtpu: 0.0.40
codegen_flags: <defaults>
</compile_context>

<pallas_src>
import functools
import math

import jax
import jax.numpy as jnp
from jax import lax
from jax.experimental import pallas as pl
from jax.experimental.pallas import tpu as pltpu


def _round_up(x, m):
    return (x + m - 1) // m * m


@functools.lru_cache(maxsize=None)
def _vmem_limit_bytes(frac=0.75):
    """Scoped-VMEM limit ≈ 75% of physical: ~96 MiB on v5e/v6e, ~48 MiB on v7x."""
    try:
        cap = pltpu.get_tpu_info().vmem_capacity_bytes
    except Exception:
        cap = 64 * 1024 * 1024            # conservative (v7x-sized) fallback
    return int(cap * frac)


@functools.lru_cache(maxsize=None)
def _roll_mode():
    """Probe pltpu.roll's rotation direction once with a tiny pallas_call.

    'right'  : result[i] = x[i - shift]  (jnp.roll semantics) -> crop starts at TQ-1
    'left'   : result[i] = x[i + shift]                        -> crop starts at 0
    'concat' : pltpu.roll unavailable -> lane-slice + concat fallback rotation
    """
    def kern(x_ref, o_ref):
        o_ref[...] = pltpu.roll(x_ref[...], 1, 1)

    try:
        x = jnp.tile(jnp.arange(128, dtype=jnp.int32)[None, :], (8, 1))
        out = pl.pallas_call(kern, out_shape=jax.ShapeDtypeStruct((8, 128), jnp.int32))(x)
        v = int(jax.device_get(out[0, 1]))
        return {0: "right", 2: "left"}.get(v, "concat")
    except Exception:
        return "concat"


# ----------------------------------------------------------------------------
# Pallas kernel: row-tiled dense linear layer   out = x @ W_t + b
# ----------------------------------------------------------------------------
def _linear_kernel(x_ref, w_ref, b_ref, o_ref, *, mm_dtype):
    x = x_ref[...].astype(mm_dtype)
    w = w_ref[...].astype(mm_dtype)
    acc = jnp.dot(x, w, preferred_element_type=jnp.float32) + b_ref[...]
    o_ref[...] = acc.astype(o_ref.dtype)


def pallas_linear(x2d, w_t, bias, *, mm_dtype=jnp.float32, out_dtype=jnp.float32, row_tile=256):
    """x2d: (N, F_in). w_t: (F_in, F_out) pre-transposed (and pre-cast). bias: (F_out,) or None."""
    n, f_in = x2d.shape
    f_out = w_t.shape[1]
    b = (jnp.zeros((f_out,), jnp.float32) if bias is None else bias).reshape(1, f_out)
    # No pad round-trip: either a single full-size block, or 256-row tiles with a ragged last
    # block handled by the pl.cdiv grid (out-of-range rows are dropped on writeback).
    tile = n if n <= row_tile else row_tile

    return pl.pallas_call(
        functools.partial(_linear_kernel, mm_dtype=mm_dtype),
        out_shape=jax.ShapeDtypeStruct((n, f_out), out_dtype),
        grid=(pl.cdiv(n, tile),),
        in_specs=[
            pl.BlockSpec((tile, f_in), lambda i: (i, 0)),
            pl.BlockSpec((f_in, f_out), lambda i: (0, 0)),   # resident weight, never re-fetched
            pl.BlockSpec((1, f_out), lambda i: (0, 0)),
        ],
        out_specs=pl.BlockSpec((tile, f_out), lambda i: (i, 0)),
        compiler_params=pltpu.CompilerParams(
            dimension_semantics=("parallel",),
            vmem_limit_bytes=_vmem_limit_bytes()),
    )(x2d, w_t, b)


# ----------------------------------------------------------------------------
# Pallas kernel: relative-position attention core.
# Grid = (batch, query-row tiles). One (TQ, T2) score tile per head per step.
# ----------------------------------------------------------------------------
def _rel_attn_kernel(q_ref, k_ref, v_ref, p_ref, mask_ref, bu_ref, bv_ref, o_ref, *,
                     n_head, d_k, t1, tq_size, scale, mm_dtype, roll_mode):
    tq = pl.program_id(1)
    q = q_ref[0]                         # (TQ, F)  heads fused on the lane axis
    k = k_ref[0]                         # (T2, F)
    v = v_ref[0]                         # (T2, F)
    masked = mask_ref[0] != 0            # (TQ, T2) True == masked out
    t2 = k.shape[0]

    # Positional window: only the TQ+T2 rows of the (zero-padded, length 2*T2) p that this
    # query tile can reach.  Window start is a multiple of TQ (p was padded in the wrapper).
    win = tq_size + t2
    start = pl.multiple_of(t1 - (tq + 1) * tq_size, tq_size)
    p_win = p_ref[0, pl.ds(start, win), :]                      # (W, F)

    # q shipped once; pos biases added here; 1/sqrt(d_k) folded into the query (F cols, not T1*T2).
    qf = q.astype(jnp.float32)
    qu = ((qf + bu_ref[...]) * scale).astype(mm_dtype)
    qv = ((qf + bv_ref[...]) * scale).astype(mm_dtype)
    kc = k.astype(mm_dtype)
    pc = p_win.astype(mm_dtype)
    vc = v.astype(mm_dtype)

    # Relative-shift plumbing, hoisted out of the head loop (selection masks reused per head).
    # Identity (tile-local): bd[il, j] = c_win[il, (TQ-1) + j - il].
    roll_w = _round_up(win, 128)                                # keep rotation width lane-aligned
    il = lax.broadcasted_iota(jnp.int32, (tq_size, 1), 0)
    if roll_mode == "left":
        shift_amt, crop0 = (tq_size - 1) - il, 0
    else:  # "right" (jnp.roll semantics) or the concat fallback (also a right rotation)
        shift_amt, crop0 = il, tq_size - 1
    nbits = (tq_size - 1).bit_length()
    sel = [jnp.broadcast_to((shift_amt & (1 << kb)) != 0, (tq_size, roll_w))
           for kb in range(nbits)]
    pad_cols = roll_w - win
    zpad = jnp.zeros((tq_size, pad_cols), jnp.float32) if pad_cols else None

    def rel_shift(c):
        # c: (TQ, W) with c[il, m] = qv[il] . p[start+m]  ->  (TQ, T2)
        if zpad is not None:
            c = jnp.concatenate([c, zpad], axis=1)
        for kb in range(nbits):
            s = 1 << kb
            if roll_mode == "concat":
                rolled = jnp.concatenate([c[:, roll_w - s:], c[:, :roll_w - s]], axis=1)
            else:
                rolled = pltpu.roll(c, s, 1)        # XLU lane rotation (separate slot from VALU)
            c = jnp.where(sel[kb], rolled, c)
        return c[:, crop0:crop0 + t2]

    dn = (((1,), (1,)), ((), ()))                   # contract the feature dim of both operands
    outs = []
    # Unrolled head loop: per-head (TQ,T2)/(TQ,W) temporaries are small thanks to the T1 tiling.
    for h in range(n_head):
        sl = slice(h * d_k, (h + 1) * d_k)
        ac = lax.dot_general(qu[:, sl], kc[:, sl], dn, preferred_element_type=jnp.float32)
        bd = rel_shift(
            lax.dot_general(qv[:, sl], pc[:, sl], dn, preferred_element_type=jnp.float32))

        scores = jnp.where(masked, -10000.0, ac + bd)
        mx = jnp.max(scores, axis=-1, keepdims=True)
        e = jnp.exp(scores - mx)     # TODO(synk): bf16 exp on v6e/v7x to relieve the EUP slot.
        den = jnp.sum(e, axis=-1, keepdims=True)
        attn = e * pl.reciprocal(den, approx=True)     # EUP slot instead of a VALU divide
        attn = jnp.where(masked, 0.0, attn)
        # TODO(synk): dropout on `attn` omitted — module evaluated in eval/inference mode.

        outs.append(jnp.dot(attn.astype(mm_dtype), vc[:, sl],
                            preferred_element_type=jnp.float32))           # (TQ, d_k)

    # ONE lane-dense full-width store in final (batch, time1, n_feat) layout.
    o_ref[0] = jnp.concatenate(outs, axis=-1).astype(o_ref.dtype)


def _choose_tq(t1):
    """Query-row tile: a multiple-of-8 divisor of T1 (prefer 128), else the full T1."""
    if t1 <= 128:
        return t1
    for cand in (128, 256, 192, 64, 32, 16, 8):
        if t1 % cand == 0:
            return cand
    return t1


def pallas_rel_attention(q, k, v, p_pad, mask_i8, bias_u, bias_v, n_head, *,
                         mm_dtype=jnp.float32, out_dtype=jnp.float32):
    B, T1, F = q.shape
    T2 = k.shape[1]
    Bp, P_pad, _ = p_pad.shape
    d_k = F // n_head
    # The windowed rel-shift identity is only valid under these conditions (always true for this
    # module, where pos_emb has length 2*T2-1) — keep the asserts.
    assert T1 <= T2, "RelPositionMultiHeadAttention Pallas kernel requires time1 <= time2"
    assert P_pad == 2 * T2

    tq_size = _choose_tq(T1)
    n_tq = T1 // tq_size
    p_map = (lambda b, t: (0, 0, 0)) if Bp == 1 else (lambda b, t: (b, 0, 0))
    kernel = functools.partial(
        _rel_attn_kernel, n_head=n_head, d_k=d_k, t1=T1, tq_size=tq_size,
        scale=1.0 / math.sqrt(d_k), mm_dtype=mm_dtype, roll_mode=_roll_mode())

    return pl.pallas_call(
        kernel,
        out_shape=jax.ShapeDtypeStruct((B, T1, F), out_dtype),
        grid=(B, n_tq),
        in_specs=[
            pl.BlockSpec((1, tq_size, F), lambda b, t: (b, t, 0)),     # q tile
            pl.BlockSpec((1, T2, F), lambda b, t: (b, 0, 0)),          # k  (resident across tq)
            pl.BlockSpec((1, T2, F), lambda b, t: (b, 0, 0)),          # v  (resident across tq)
            pl.BlockSpec((1, P_pad, F), p_map),                        # padded p (resident;
                                                                       #  windowed in-kernel)
            pl.BlockSpec((1, tq_size, T2), lambda b, t: (b, t, 0)),    # mask tile (int8)
            pl.BlockSpec((1, F), lambda b, t: (0, 0)),                 # pos_bias_u (flattened)
            pl.BlockSpec((1, F), lambda b, t: (0, 0)),                 # pos_bias_v (flattened)
        ],
        out_specs=pl.BlockSpec((1, tq_size, F), lambda b, t: (b, t, 0)),
        compiler_params=pltpu.CompilerParams(
            dimension_semantics=("parallel", "parallel"),              # B and TQ both megacore-able
            vmem_limit_bytes=_vmem_limit_bytes()),
    )(q, k, v, p_pad, mask_i8, bias_u, bias_v)


# ----------------------------------------------------------------------------
# Module wrapper (parameter container + forward glue)
# ----------------------------------------------------------------------------
class RelPositionMultiHeadAttentionPallas:
    def __init__(self, n_head, n_feat, dropout_rate, key, use_bf16_mxu=False):
        assert n_feat % n_head == 0
        self.h = n_head
        self.d_k = n_feat // n_head
        self.s_d_k = math.sqrt(self.d_k)
        self.dropout_rate = dropout_rate          # unused (eval mode)
        # bf16 MXU operands + bf16 projection activations: recommended on v6e/v7x (918/996 TF/s
        # bf16 vs multi-pass f32, halved HBM/VMEM for the attention core).  Softmax / elementwise
        # math stays f32, so the flag is also usable on v5e.
        self.mm_dtype = jnp.bfloat16 if use_bf16_mxu else jnp.float32
        self.act_dtype = self.mm_dtype

        ks = jax.random.split(key, 11)
        init = lambda kk, shape: 0.1 * jax.random.normal(kk, shape, jnp.float32)
        self.w_q, self.b_q = init(ks[0], (n_feat, n_feat)), init(ks[1], (n_feat,))
        self.w_k, self.b_k = init(ks[2], (n_feat, n_feat)), init(ks[3], (n_feat,))
        self.w_v, self.b_v = init(ks[4], (n_feat, n_feat)), init(ks[5], (n_feat,))
        self.w_out, self.b_out = init(ks[6], (n_feat, n_feat)), init(ks[7], (n_feat,))
        self.w_pos = init(ks[8], (n_feat, n_feat))                 # linear_pos has no bias
        self.pos_bias_u = init(ks[9], (n_head, self.d_k))
        self.pos_bias_v = init(ks[10], (n_head, self.d_k))

        # Pre-transpose / pre-fuse (q|k|v) / pre-cast the kernel weights ONCE.
        to_mm = lambda w: jnp.asarray(w.T, dtype=self.mm_dtype)
        self.w_q_t, self.w_k_t, self.w_v_t = to_mm(self.w_q), to_mm(self.w_k), to_mm(self.w_v)
        self.w_qkv_t = jnp.concatenate([self.w_q_t, self.w_k_t, self.w_v_t], axis=1)   # (F, 3F)
        self.b_qkv = jnp.concatenate([self.b_q, self.b_k, self.b_v], axis=0)
        self.w_pos_t = to_mm(self.w_pos)
        self.w_out_t = to_mm(self.w_out)
        self.bias_u_flat = self.pos_bias_u.reshape(1, n_feat)      # matches lane-fused head layout
        self.bias_v_flat = self.pos_bias_v.reshape(1, n_feat)

        _roll_mode()    # warm the pltpu.roll direction probe outside of any jit

    def __call__(self, query, key, value, mask, pos_emb):
        B, T1, F = query.shape
        T2 = key.shape[1]
        assert pos_emb.shape[1] == 2 * T2 - 1

        if (query is key) and (key is value):
            # Self-attention: ONE fused q/k/v GEMM — the activation is read from HBM once.
            qkv = pallas_linear(query.reshape(B * T1, F), self.w_qkv_t, self.b_qkv,
                                mm_dtype=self.mm_dtype, out_dtype=self.act_dtype)
            q = qkv[:, :F].reshape(B, T1, F)
            k = qkv[:, F:2 * F].reshape(B, T2, F)
            v = qkv[:, 2 * F:].reshape(B, T2, F)
        else:
            q = pallas_linear(query.reshape(B * T1, F), self.w_q_t, self.b_q,
                              mm_dtype=self.mm_dtype, out_dtype=self.act_dtype).reshape(B, T1, F)
            k = pallas_linear(key.reshape(B * T2, F), self.w_k_t, self.b_k,
                              mm_dtype=self.mm_dtype, out_dtype=self.act_dtype).reshape(B, T2, F)
            v = pallas_linear(value.reshape(B * T2, F), self.w_v_t, self.b_v,
                              mm_dtype=self.mm_dtype, out_dtype=self.act_dtype).reshape(B, T2, F)

        # Pad pos_emb by one never-used zero frame so its projected length is 2*T2: keeps the
        # in-kernel positional window (TQ+T2 rows, start a multiple of TQ) aligned and in-bounds.
        Bp = pos_emb.shape[0]
        pos_pad = jnp.pad(pos_emb, ((0, 0), (0, 1), (0, 0)))
        p = pallas_linear(pos_pad.reshape(Bp * 2 * T2, F), self.w_pos_t, None,
                          mm_dtype=self.mm_dtype, out_dtype=self.act_dtype).reshape(Bp, 2 * T2, F)
        # NOTE: p is NOT broadcast over batch; the attention BlockSpec reuses block 0 when Bp==1.

        if mask is None:
            mask_i8 = jnp.zeros((B, T1, T2), jnp.int8)
        else:
            mask_i8 = mask.astype(jnp.int8)        # 4x less HBM traffic than int32

        x = pallas_rel_attention(q, k, v, p, mask_i8, self.bias_u_flat, self.bias_v_flat,
                                 self.h, mm_dtype=self.mm_dtype, out_dtype=self.act_dtype)
        return pallas_linear(x.reshape(B * T1, F), self.w_out_t, self.b_out,
                             mm_dtype=self.mm_dtype, out_dtype=jnp.float32).reshape(B, T1, F)


# ----------------------------------------------------------------------------
# Pure-JAX reference (mirrors the torch forward, incl. the pad/reshape rel_shift)
# ----------------------------------------------------------------------------
def reference_forward(m, query, key, value, mask, pos_emb):
    B, T1, F = query.shape
    T2 = key.shape[1]
    H, D = m.h, m.d_k
    lin = lambda x, w, b: (x @ w.T) if b is None else (x @ w.T + b)

    q = lin(query, m.w_q, m.b_q).reshape(B, T1, H, D)
    k = lin(key, m.w_k, m.b_k).reshape(B, T2, H, D).transpose(0, 2, 1, 3)
    v = lin(value, m.w_v, m.b_v).reshape(B, T2, H, D).transpose(0, 2, 1, 3)
    p = lin(pos_emb, m.w_pos, None).reshape(pos_emb.shape[0], -1, H, D).transpose(0, 2, 1, 3)
    if p.shape[0] == 1 and B > 1:
        p = jnp.broadcast_to(p, (B,) + p.shape[1:])

    q_u = (q + m.pos_bias_u).transpose(0, 2, 1, 3)
    q_v = (q + m.pos_bias_v).transpose(0, 2, 1, 3)

    ac = jnp.einsum("bhid,bhjd->bhij", q_u, k)
    bd = jnp.einsum("bhid,bhjd->bhij", q_v, p)

    b_, h_, t1, plen = bd.shape
    bd = jnp.pad(bd, ((0, 0), (0, 0), (0, 0), (1, 0)))
    bd = bd.reshape(b_, h_, plen + 1, t1)[:, :, 1:].reshape(b_, h_, t1, plen)
    bd = bd[:, :, :, : ac.shape[-1]]

    scores = (ac + bd) / m.s_d_k
    msk = mask[:, None].astype(bool)
    scores = jnp.where(msk, -10000.0, scores)
    attn = jax.nn.softmax(scores, axis=-1)
    attn = jnp.where(msk, 0.0, attn)
    x = jnp.einsum("bhij,bhjd->bhid", attn, v)
    x = x.transpose(0, 2, 1, 3).reshape(B, T1, H * D)
    return lin(x, m.w_out, m.b_out)


if __name__ == "__main__":
    B, T, H, F = 2, 8, 4, 32   # batch, time, heads, n_feat  (d_k = 8)

    root = jax.random.PRNGKey(0)
    kx, kp, kparam = jax.random.split(root, 3)
    x_in = jax.random.normal(kx, (B, T, F), jnp.float32)
    pos_emb = jax.random.normal(kp, (1, 2 * T - 1, F), jnp.float32)   # batch-1 pos emb

    # boolean mask, True == masked-out (padding mask: batch 1 has 2 padded frames)
    lengths = jnp.array([T, T - 2])
    pos = jnp.arange(T)
    pad = pos[None, :] >= lengths[:, None]           # (B, T)
    mask = pad[:, None, :] | pad[:, :, None]         # (B, T, T)

    # f32 path: bit-for-bit comparable against the pure-JAX reference.
    mha = RelPositionMultiHeadAttentionPallas(n_head=H, n_feat=F, dropout_rate=0.1, key=kparam)
    out = jax.block_until_ready(mha(x_in, x_in, x_in, mask, pos_emb))
    ref = reference_forward(mha, x_in, x_in, x_in, mask, pos_emb)
    assert out.shape == (B, T, F)
    if not jnp.allclose(out, ref, atol=1e-2, rtol=1e-2):
        raise AssertionError("Pallas output mismatch vs pure-JAX reference (f32 path)")

    # bf16 MXU path (recommended default on v6e/v7x): exercise it and sanity-check numerics.
    mha_bf16 = RelPositionMultiHeadAttentionPallas(n_head=H, n_feat=F, dropout_rate=0.1,
                                                   key=kparam, use_bf16_mxu=True)
    out_bf16 = jax.block_until_ready(mha_bf16(x_in, x_in, x_in, mask, pos_emb))
    assert bool(jnp.all(jnp.isfinite(out_bf16)))
    assert float(jnp.max(jnp.abs(out_bf16 - ref))) < 0.25

    print("KERNEL_OK")
</pallas_src>

<mosaic_0001>
module attributes {stable_mosaic.version = 11 : i64} {
  func.func @kern(%arg0: memref<8x128xi32, #tpu.memory_space<vmem>>, %arg1: memref<8x128xi32, #tpu.memory_space<vmem>>) attributes {dimension_semantics = [], scalar_prefetch = 0 : i64, scratch_operands = 0 : i64, tpu.core_type = #tpu.core_type<tc>} {
    %c0 = arith.constant 0 : index
    %c0_0 = arith.constant 0 : index
    %0 = vector.load %arg0[%c0, %c0_0] : memref<8x128xi32, #tpu.memory_space<vmem>>, vector<8x128xi32>
    %c1_i32 = arith.constant 1 : i32
    %1 = tpu.dynamic_rotate %0 by %c1_i32 dim 1 : vector<8x128xi32>, i32 -> vector<8x128xi32>
    %c0_1 = arith.constant 0 : index
    %c0_2 = arith.constant 0 : index
    %2 = vector.load %arg1[%c0_1, %c0_2] : memref<8x128xi32, #tpu.memory_space<vmem>>, vector<8x128xi32>
    tpu.vector_store %arg1[%c0_1, %c0_2], %1 {strides = array<i32>} : memref<8x128xi32, #tpu.memory_space<vmem>>, vector<8x128xi32>,
    return
  }
}

module attributes {stable_mosaic.version = 11 : i64} {
  func.func @_linear_kernel(%arg0: i32, %arg1: memref<16x32xf32, #tpu.memory_space<vmem>>, %arg2: memref<32x96xf32, #tpu.memory_space<vmem>>, %arg3: memref<1x96xf32, #tpu.memory_space<vmem>>, %arg4: memref<16x96xf32, #tpu.memory_space<vmem>>) attributes {dimension_semantics = [#tpu.dimension_semantics<parallel>], iteration_bounds = array<i64: 1>, scalar_prefetch = 0 : i64, scratch_operands = 0 : i64, tpu.core_type = #tpu.core_type<tc>, window_params = [{transform_indices = @transform_0, window_bounds = array<i64: 16, 32>}, {pipeline_mode = #tpu.pipeline_mode<synchronous>, transform_indices = @transform_1, window_bounds = array<i64: 32, 96>}, {pipeline_mode = #tpu.pipeline_mode<synchronous>, transform_indices = @transform_2, window_bounds = array<i64: 1, 96>}, {transform_indices = @transform_3, window_bounds = array<i64: 16, 96>}]} {
    %c0 = arith.constant 0 : index
    %c0_0 = arith.constant 0 : index
    %0 = vector.load %arg1[%c0, %c0_0] : memref<16x32xf32, #tpu.memory_space<vmem>>, vector<16x32xf32>
    %c0_1 = arith.constant 0 : index
    %c0_2 = arith.constant 0 : index
    %1 = vector.load %arg2[%c0_1, %c0_2] : memref<32x96xf32, #tpu.memory_space<vmem>>, vector<32x96xf32>
    %cst = arith.constant dense<0.000000e+00> : vector<16x96xf32>
    %2 = tpu.matmul %0, %1, %cst {dimension_numbers = #tpu.dot_dimension_numbers<[1], [0], [0], [1], [0, 0, 1, 1], [], []>} : vector<16x32xf32>, vector<32x96xf32>, vector<16x96xf32> -> vector<16x96xf32>
    %c0_3 = arith.constant 0 : index
    %c0_4 = arith.constant 0 : index
    %3 = vector.load %arg3[%c0_3, %c0_4] : memref<1x96xf32, #tpu.memory_space<vmem>>, vector<1x96xf32>
    %4 = vector.broadcast %3 : vector<1x96xf32> to vector<16x96xf32>
    %5 = arith.addf %2, %4 : vector<16x96xf32>
    %c0_5 = arith.constant 0 : index
    %c0_6 = arith.constant 0 : index
    %6 = vector.load %arg4[%c0_5, %c0_6] : memref<16x96xf32, #tpu.memory_space<vmem>>, vector<16x96xf32>
    tpu.vector_store %arg4[%c0_5, %c0_6], %5 {strides = array<i32>} : memref<16x96xf32, #tpu.memory_space<vmem>>, vector<16x96xf32>,
    return
  }
  func.func @transform_0(%arg0: i32) -> (i32, i32) {
    %c0_i32 = arith.constant 0 : i32
    %c0_i32_0 = arith.constant 0 : i32
    return %arg0, %c0_i32 : i32, i32
  }
  func.func @transform_1(%arg0: i32) -> (i32, i32) {
    %c0_i32 = arith.constant 0 : i32
    %c0_i32_0 = arith.constant 0 : i32
    %c0_i32_1 = arith.constant 0 : i32
    return %c0_i32, %c0_i32_0 : i32, i32
  }
  func.func @transform_2(%arg0: i32) -> (i32, i32) {
    %c0_i32 = arith.constant 0 : i32
    %c0_i32_0 = arith.constant 0 : i32
    %c0_i32_1 = arith.constant 0 : i32
    return %c0_i32, %c0_i32_0 : i32, i32
  }
  func.func @transform_3(%arg0: i32) -> (i32, i32) {
    %c0_i32 = arith.constant 0 : i32
    %c0_i32_0 = arith.constant 0 : i32
    return %arg0, %c0_i32 : i32, i32
  }
}

</mosaic_0001>

<llo_original>
// kernel: tpu_custom_call.1
$region0: #{tpu_custom_call.1}
  #allocation0 [shape = 'u32[]', space=smem, size = 0x4, offset = 0x4, fixed_abs, tag = 'smem constant byte address 0x4 - core index']
  #allocation1 [shape = 'u32[72,128]{1,0:T(1,128)}', space=vmem, size = 0x9000, scoped, tag = 'internal scratch']
  %s0 = inlined_call_operand.hbm [shape: s32[8,128], index: 0, kind: input, shape index: {}]
  %s1 = inlined_call_operand.hbm [shape: s32[8,128], index: 1, kind: output, shape index: {}]
  %s2 = sld [smem:[#allocation0]]
  $region18: #{tpu_custom_call.1} parent=0
    _
  %s4 = ssub.s32 1, %s2
  %s5 = scalar_select 0, %s4, %s2
  $region1: #{tpu_custom_call.1} parent=0
    #allocation2 [shape = 'u8[4096]{0}', space=vmem, size = 0x1000, scoped, tag = 'input window, operand 0, single buffered']
    #allocation3 [shape = 's32[1]{0}', space=sflag, size = 0x4, scoped, tag = 'scoped memory for tpu_custom_call.1']
    #allocation4 [shape = 's32[1]{0}', space=sflag, size = 0x4, scoped, tag = 'scoped memory for tpu_custom_call.1']
    #allocation5 [shape = 'u8[4096]{0}', space=vmem, size = 0x1000, scoped, tag = 'output window, operand 0, single buffered']
    %6 = vsyncpa [#allocation3], 0
    %7 = vsyncpa [#allocation4], 0
    // Predicated region
    $region2: #{tpu_custom_call.1} parent=1 // pred_check
      _
    $region3: #{tpu_custom_call.1} parent=1 // pred_check_branch
      %9 = sbr.rel (0) target = $region5
    $region4: #{tpu_custom_call.1} parent=1 // pred_region
      %11 = vsyncadd [#allocation3], 0
      %s13 = sshll.u32 %s0, 4
      %s14 = int_to_ptr.hbm [resolvable:$true] %s13
      %s15 = sshll.u32 [#allocation2], 4
      %s16 = int_to_ptr.vmem [resolvable:$true] %s15
      %18 = dma.hbm_to_vmem [thread:$0]  %s14, 128, %s16, [#allocation3]
    $region5: #{tpu_custom_call.1} parent=1 // pred_fallthru
      _
    // Predicated region
    $region6: #{tpu_custom_call.1} parent=1 // pred_check
      _
    $region7: #{tpu_custom_call.1} parent=1 // pred_check_branch
      %20 = sbr.rel (0) target = $region9
    $region8: #{tpu_custom_call.1} parent=1 // pred_region
      %22 = dma.done [#allocation3], 128
    $region9: #{tpu_custom_call.1} parent=1 // pred_fallthru
      _
    %v23 = vld [vmem:[#allocation2] sm:$0xff]
    %24 = vrot.lane.b32.xlu0 %v23, 1
    %v25 = vpop.permute.xlu0 %24
    %26 = vst [vmem:[#allocation5] sm:$0xff] %v25
    // Predicated region
    $region10: #{tpu_custom_call.1} parent=1 // pred_check
      _
    $region11: #{tpu_custom_call.1} parent=1 // pred_check_branch
      %28 = sbr.rel (0) target = $region13
    $region12: #{tpu_custom_call.1} parent=1 // pred_region
      %30 = vsyncadd [#allocation4], 0
      %s32 = sshll.u32 [#allocation5], 4
      %s33 = int_to_ptr.vmem [resolvable:$true] %s32
      %s34 = sshll.u32 %s1, 4
      %s35 = int_to_ptr.hbm [resolvable:$true] %s34
      %37 = dma.vmem_to_hbm [thread:$0]  %s33, 128, %s35, [#allocation4]
    $region13: #{tpu_custom_call.1} parent=1 // pred_fallthru
      _
    // Predicated region
    $region14: #{tpu_custom_call.1} parent=1 // pred_check
      _
    $region15: #{tpu_custom_call.1} parent=1 // pred_check_branch
      %39 = sbr.rel (0) target = $region17
    $region16: #{tpu_custom_call.1} parent=1 // pred_region
      %41 = dma.done [#allocation4], 128
    $region17: #{tpu_custom_call.1} parent=1 // pred_fallthru
      _
    %42 = vsyncpa [#allocation3], 1
    %43 = vsyncpa [#allocation4], 1

// kernel: tpu_custom_call.1
$region0: #{tpu_custom_call.1}
  #allocation0 [shape = 'u32[]', space=smem, size = 0x4, offset = 0x4, fixed_abs, tag = 'smem constant byte address 0x4 - core index']
  #allocation1 [shape = 'u32[72,128]{1,0:T(1,128)}', space=vmem, size = 0x9000, scoped, tag = 'internal scratch']
  %s0 = inlined_call_operand.hbm [shape: f32[16,32], index: 0, kind: input, shape index: {}]
  %s1 = inlined_call_operand.hbm [shape: f32[32,96], index: 1, kind: input, shape index: {}]
  %s2 = inlined_call_operand.vmem [shape: f32[1,96], index: 2, kind: input, shape index: {}]
  %s3 = inlined_call_operand.hbm [shape: f32[16,96], index: 3, kind: output, shape index: {}]
  %s4 = sld [smem:[#allocation0]]
  $region30: #{tpu_custom_call.1} parent=0
    _
  %s6 = ssub.s32 1, %s4
  %s7 = scalar_select 0, %s6, %s4
  $region1: #{tpu_custom_call.1} parent=0
    #allocation2 [shape = 'u8[8192]{0}', space=vmem, size = 0x2000, scoped, tag = 'input window, operand 0, single buffered']
    #allocation3 [shape = 's32[1]{0}', space=sflag, size = 0x4, scoped, tag = 'scoped memory for tpu_custom_call.1']
    #allocation4 [shape = 's32[1]{0}', space=sflag, size = 0x4, scoped, tag = 'scoped memory for tpu_custom_call.1']
    #allocation5 [shape = 'u8[16384]{0}', space=vmem, size = 0x4000, scoped, tag = 'input window, operand 1, single buffered']
    #allocation6 [shape = 's32[1]{0}', space=sflag, size = 0x4, scoped, tag = 'scoped memory for tpu_custom_call.1']
    #allocation7 [shape = 'u8[8192]{0}', space=vmem, size = 0x2000, scoped, tag = 'output window, operand 0, single buffered']
    %8 = vsyncpa [#allocation3], 0
    %9 = vsyncpa [#allocation6], 0
    %10 = vsyncpa [#allocation4], 0
    // Predicated region
    $region2: #{tpu_custom_call.1} parent=1 // pred_check
      _
    $region3: #{tpu_custom_call.1} parent=1 // pred_check_branch
      %12 = sbr.rel (0) target = $region5
    $region4: #{tpu_custom_call.1} parent=1 // pred_region
      %14 = vsyncadd [#allocation3], 0
      %s15 = sshll.u32 %s0, 4
      %s16 = int_to_ptr.hbm [resolvable:$true] %s15
      %s17 = sshll.u32 [#allocation2], 4
      %s18 = int_to_ptr.vmem [resolvable:$true] %s17
      %23 = dma.hbm_to_vmem [thread:$0]  %s16, 256, %s18, [#allocation3], 128, 128, 8
    $region5: #{tpu_custom_call.1} parent=1 // pred_fallthru
      _
    // Predicated region
    $region6: #{tpu_custom_call.1} parent=1 // pred_check
      _
    $region7: #{tpu_custom_call.1} parent=1 // pred_check_branch
      %25 = sbr.rel (0) target = $region9
    $region8: #{tpu_custom_call.1} parent=1 // pred_region
      %27 = vsyncadd [#allocation6], 0
      %s28 = sshll.u32 %s1, 4
      %s29 = int_to_ptr.hbm [resolvable:$true] %s28
      %s30 = sshll.u32 [#allocation5], 4
      %s31 = int_to_ptr.vmem [resolvable:$true] %s30
      %36 = dma.hbm_to_vmem [thread:$0]  %s29, 512, %s31, [#allocation6], 128, 128, 8
    $region9: #{tpu_custom_call.1} parent=1 // pred_fallthru
      _
    // Predicated region
    $region10: #{tpu_custom_call.1} parent=1 // pred_check
      _
    $region11: #{tpu_custom_call.1} parent=1 // pred_check_branch
      %38 = sbr.rel (0) target = $region13
    $region12: #{tpu_custom_call.1} parent=1 // pred_region
      _
    $region13: #{tpu_custom_call.1} parent=1 // pred_fallthru
      _
    // Predicated region
    $region14: #{tpu_custom_call.1} parent=1 // pred_check
      _
    $region15: #{tpu_custom_call.1} parent=1 // pred_check_branch
      %40 = sbr.rel (0) target = $region17
    $region16: #{tpu_custom_call.1} parent=1 // pred_region
      %42 = dma.done [#allocation3], 256
    $region17: #{tpu_custom_call.1} parent=1 // pred_fallthru
      _
    // Predicated region
    $region18: #{tpu_custom_call.1} parent=1 // pred_check
      _
    $region19: #{tpu_custom_call.1} parent=1 // pred_check_branch
      %44 = sbr.rel (0) target = $region21
    $region20: #{tpu_custom_call.1} parent=1 // pred_region
      %46 = dma.done [#allocation6], 512
    $region21: #{tpu_custom_call.1} parent=1 // pred_fallthru
      _
    %v47 = vld [vmem:[#allocation2] sm:$0xff]
    %v48 = vld [vmem:[#allocation2 + $0x8] sm:$0xff]
    %v49 = vld [vmem:[#allocation5] sm:$0xff]
    %v50 = vld [vmem:[#allocation5 + $0x8] sm:$0xff]
    %v51 = vld [vmem:[#allocation5 + $0x10] sm:$0xff]
    %v52 = vld [vmem:[#allocation5 + $0x18] sm:$0xff]
    %v53 = vld [vmem:[%s2] sm:$0x1]
    %v55 = vperm.slane %v53, 0
    %vm57 = vcmask 261120
    %v59 = vsel %vm57, %v47, 0
    %v62 = vsel %vm57, %v48, 0
    %64 = vmatpush.msra.mxu0 0.0
    %65 = vmatpush.msra.mxu0 0.0
    %66 = vmatpush.msra.mxu0 0.0
    %67 = vmatpush.msra.mxu0 0.0
    %68 = vmatpush.msra.mxu0 0.0
    %69 = vmatpush.msra.mxu0 0.0
    %70 = vmatpush.msra.mxu0 0.0
    %71 = vmatpush.msra.mxu0 0.0
    %72 = vmatpush.msra.mxu0 0.0
    %73 = vmatpush.msra.mxu0 0.0
    %74 = vmatpush.msra.mxu0 0.0
    %75 = vmatpush.msra.mxu0 0.0
    %76 = vmatpush.msra.mxu0 %v52
    %77 = vmatpush.msra.mxu0 %v51
    %78 = vmatpush.msra.mxu0 %v50
    %79 = vmatpush.msra.mxu0 %v49
    %80 = vmatmul.f32.gmra.mxu0 %v59
    %v81 = vpop.f32.mrf.mxu0
    %v82 = vadd.f32 %v55, %v81
    %83 = vmatmul.f32.gmra.mxu0 %v62
    %v84 = vpop.f32.mrf.mxu0
    %v85 = vadd.f32 %v55, %v84
    %86 = vdwg.mxu0
    %vm87 = vcmask 785408
    %88 = vst.msk [vmem:[#allocation7] sm:$0xff] %vm87, %v82
    %89 = vst.msk [vmem:[#allocation7 + $0x8] sm:$0xff] %vm87, %v85
    // Predicated region
    $region22: #{tpu_custom_call.1} parent=1 // pred_check
      _
    $region23: #{tpu_custom_call.1} parent=1 // pred_check_branch
      %91 = sbr.rel (0) target = $region25
    $region24: #{tpu_custom_call.1} parent=1 // pred_region
      %93 = vsyncadd [#allocation4], 0
      %s94 = sshll.u32 [#allocation7], 4
      %s95 = int_to_ptr.vmem [resolvable:$true] %s94
      %s96 = sshll.u32 %s3, 4
      %s97 = int_to_ptr.hbm [resolvable:$true] %s96
      %102 = dma.vmem_to_hbm [thread:$0]  %s95, 256, %s97, [#allocation4], 128, 128, 8
    $region25: #{tpu_custom_call.1} parent=1 // pred_fallthru
      _
    // Predicated region
    $region26: #{tpu_custom_call.1} parent=1 // pred_check
      _
    $region27: #{tpu_custom_call.1} parent=1 // pred_check_branch
      %104 = sbr.rel (0) target = $region29
    $region28: #{tpu_custom_call.1} parent=1 // pred_region
      %106 = dma.done [#allocation4], 256
    $region29: #{tpu_custom_call.1} parent=1 // pred_fallthru
      _
    %107 = vsyncpa [#allocation3], 1
    %108 = vsyncpa [#allocation6], 1
    %109 = vsyncpa [#allocation4], 1

</llo_original>
